<compile_context>
chip_gen: v7x
topology: tpu7x:2x2x1
jax: 0.10.0
libtpu: 0.0.40
codegen_flags: <defaults>
</compile_context>

<pallas_src>
import functools
import math

import jax
import jax.numpy as jnp
from jax import lax
from jax.experimental import pallas as pl
from jax.experimental.pallas import tpu as pltpu


def _round_up(x, m):
    return ((x + m - 1) // m) * m


def _supcon_kernel(keys_ref, labq_ref, labk_ref, loss_ref, *,
                   inv_temp, n_actual, pad_corr):
    """One query-row tile of the SupCon forward pass.

    keys_ref : (n_pad, d_pad) resident, pre-normalized & pre-scaled by
               sqrt(1/temperature) in the wrapper; padded rows are all-zero.
    labq_ref : (tq, 1) int32 labels for this query tile (padded rows = -1).
    labk_ref : (1, n_pad) int32 labels for all keys (padded cols = -1).
    loss_ref : (tq, 1) f32 per-row loss (0 for padded / positive-free rows).
    """
    i = pl.program_id(0)
    n_pad = keys_ref.shape[0]
    block_q = loss_ref.shape[0]
    q_start = pl.multiple_of(i * block_q, block_q)

    # Query tile is a slice of the resident key block: no second streamed
    # input, no duplicate HBM traffic, no duplicate VMEM buffer.
    q = keys_ref[pl.ds(q_start, block_q), :]

    # Gram tile on the MXU; contraction over dim 1 of both operands, so no
    # transpose of the key block is materialized.
    dot = lax.dot_general(q, keys_ref[...],
                          dimension_numbers=(((1,), (1,)), ((), ())),
                          preferred_element_type=jnp.float32)      # (tq, n_pad)

    # Row ids / self-column mask (needed for an exact denominator exclusion).
    col = lax.broadcasted_iota(jnp.int32, (block_q, n_pad), 1)
    row = lax.broadcasted_iota(jnp.int32, (block_q, 1), 0) + q_start  # (tq, 1)
    is_self = col == row

    # exp(dot - 1/T): after unit-normalization the self-similarity equals
    # 1/temperature up to fp rounding, so the constant shift is a valid
    # softmax stabilizer and the per-row max reduction disappears.
    e = jnp.where(is_self, 0.0, jnp.exp(dot - inv_temp))
    denom = jnp.sum(e, axis=1, keepdims=True)                     # (tq, 1)
    if pad_corr > 0.0:
        # Zero-padded key columns each contribute exactly exp(-1/T); subtract
        # the trace-time constant instead of an N^2 column-validity mask.
        denom = denom - pad_corr
    log_denom = jnp.log(denom + 1e-12)

    # Positive pairs: same label.  Padded columns carry label -1 and never
    # match a real label.  The always-true self match is removed with exact
    # O(tq) per-row corrections (count - 1; self dot recomputed from q).
    match = labq_ref[...] == labk_ref[...]                        # (tq, n_pad)
    pos_dot_sum = jnp.sum(jnp.where(match, dot, 0.0), axis=1, keepdims=True)
    pos_cnt = jnp.sum(jnp.where(match, 1.0, 0.0), axis=1, keepdims=True)
    qf = q.astype(jnp.float32)
    self_dot = jnp.sum(qf * qf, axis=1, keepdims=True)            # ~= dot_ii
    pos_dot_sum = pos_dot_sum - self_dot
    pos_cnt = pos_cnt - 1.0

    # mean_{j in pos} log_prob = mean_{j in pos} dot_j - 1/T - log(denom)
    mean_log_prob_pos = pos_dot_sum / (pos_cnt + 1e-12) - inv_temp - log_denom

    # Rows with no positives contribute 0 (reference: 0 / (0 + 1e-12) = 0);
    # padded query rows are dropped from the batch mean.
    valid = (row < n_actual) & (pos_cnt > 0.5)
    loss_ref[...] = jnp.where(valid, -mean_log_prob_pos, 0.0)


def _vmem_limit_bytes():
    try:
        cap = int(pltpu.get_tpu_info().vmem_capacity_bytes)
    except Exception:
        cap = 64 * 1024 * 1024  # safe across v5e / v6e / v7x
    # ~85% of physical: leave headroom for Mosaic internal scratch + buffers.
    return max(32 * 1024 * 1024, int(cap * 0.85))


def supervised_contrastive_loss(features, labels, temperature=0.07,
                                block_q=256, matmul_dtype=jnp.float32):
    """features: (N, D) float, labels: (N,) int -> scalar f32 SupCon loss."""
    n, d = features.shape
    inv_temp = 1.0 / float(temperature)

    tq = min(_round_up(int(block_q), 8), _round_up(n, 8))
    n_pad = _round_up(n, tq)
    d_pad = _round_up(d, 128)          # lane-dense operands / aligned MXU K dim
    grid = n_pad // tq

    # Normalize + fold sqrt(1/temperature) once in the wrapper (plain XLA).
    f = features.astype(jnp.float32)
    norm = jnp.maximum(jnp.sqrt(jnp.sum(f * f, axis=1, keepdims=True)), 1e-12)
    f = (f / norm) * (inv_temp ** 0.5)
    f = f.astype(matmul_dtype)
    f = jnp.pad(f, ((0, n_pad - n), (0, d_pad - d)))               # zero rows/cols

    lab_col = labels.reshape(n, 1).astype(jnp.int32)
    lab_col = jnp.pad(lab_col, ((0, n_pad - n), (0, 0)), constant_values=-1)
    lab_row = lab_col.reshape(1, n_pad)   # host-side "transpose": free plumbing

    pad_corr = float(n_pad - n) * math.exp(-inv_temp)

    kernel = functools.partial(_supcon_kernel, inv_temp=inv_temp,
                               n_actual=n, pad_corr=pad_corr)
    vmem_limit = _vmem_limit_bytes()

    def build(single_buffer_resident):
        def resident_spec(shape):
            if single_buffer_resident and hasattr(pl, "Buffered"):
                # Constant index_map block: never re-fetched, so one buffer.
                return pl.BlockSpec(shape, lambda i: (0, 0),
                                    pipeline_mode=pl.Buffered(1))
            return pl.BlockSpec(shape, lambda i: (0, 0))

        return pl.pallas_call(
            kernel,
            out_shape=jax.ShapeDtypeStruct((n_pad, 1), jnp.float32),
            grid_spec=pltpu.PrefetchScalarGridSpec(
                num_scalar_prefetch=0,
                grid=(grid,),
                in_specs=[
                    resident_spec((n_pad, d_pad)),               # keys (resident)
                    pl.BlockSpec((tq, 1), lambda i: (i, 0)),     # query labels
                    resident_spec((1, n_pad)),                   # key labels (resident)
                ],
                out_specs=pl.BlockSpec((tq, 1), lambda i: (i, 0)),
            ),
            compiler_params=pltpu.CompilerParams(
                dimension_semantics=("parallel",),
                vmem_limit_bytes=vmem_limit,
            ),
        )

    try:
        per_row = build(True)(f, lab_col, lab_row)
    except Exception:
        # Fallback if this JAX version rejects pipeline_mode=pl.Buffered(1);
        # a genuine kernel error will re-raise from the second call.
        per_row = build(False)(f, lab_col, lab_row)

    return jnp.sum(per_row) / n


def _reference_loss(features, labels, temperature=0.07):
    # Pure-JAX reference mirroring the PyTorch module exactly.
    labels = labels.reshape(-1, 1)
    mask = (labels == labels.T).astype(jnp.float32)
    norm = jnp.maximum(jnp.linalg.norm(features, axis=1, keepdims=True), 1e-12)
    f = features / norm
    dot = jnp.matmul(f, f.T) / temperature
    logits = dot - jnp.max(dot, axis=1, keepdims=True)
    n = features.shape[0]
    logits_mask = 1.0 - jnp.eye(n, dtype=jnp.float32)
    mask = mask * logits_mask
    exp_logits = jnp.exp(logits) * logits_mask
    log_prob = logits - jnp.log(exp_logits.sum(1, keepdims=True) + 1e-12)
    mean_log_prob_pos = (mask * log_prob).sum(1) / (mask.sum(1) + 1e-12)
    return -mean_log_prob_pos.mean()


if __name__ == "__main__":
    key = jax.random.PRNGKey(0)
    k_feat, k_lab = jax.random.split(key)

    # Small shapes; N=10 is deliberately not tile-aligned so the padded-row /
    # padded-column paths of the kernel are exercised.
    N, D = 10, 32
    features = jax.random.normal(k_feat, (N, D), dtype=jnp.float32)
    labels = jax.random.randint(k_lab, (N,), 0, 4, dtype=jnp.int32)

    loss = supervised_contrastive_loss(features, labels, temperature=0.07)
    loss = jax.block_until_ready(loss)

    ref = _reference_loss(features, labels, temperature=0.07)
    assert jnp.allclose(loss, ref, rtol=1e-4, atol=1e-4), (loss, ref)

    print("KERNEL_OK")
</pallas_src>

<mosaic_0001>
module attributes {stable_mosaic.version = 11 : i64} {
  func.func @_supcon_kernel(%arg0: i32, %arg1: memref<16x128xf32, #tpu.memory_space<vmem>>, %arg2: memref<16x1xi32, #tpu.memory_space<vmem>>, %arg3: memref<1x16xi32, #tpu.memory_space<vmem>>, %arg4: memref<16x1xf32, #tpu.memory_space<vmem>>) attributes {dimension_semantics = [#tpu.dimension_semantics<parallel>], iteration_bounds = array<i64: 1>, scalar_prefetch = 0 : i64, scratch_operands = 0 : i64, tpu.core_type = #tpu.core_type<tc>, window_params = [{pipeline_mode = #tpu.pipeline_mode<synchronous>, transform_indices = @transform_0, window_bounds = array<i64: 16, 128>}, {transform_indices = @transform_1, window_bounds = array<i64: 16, 1>}, {pipeline_mode = #tpu.pipeline_mode<synchronous>, transform_indices = @transform_2, window_bounds = array<i64: 1, 16>}, {transform_indices = @transform_3, window_bounds = array<i64: 16, 1>}]} {
    %c16_i32 = arith.constant 16 : i32
    %0 = arith.muli %arg0, %c16_i32 : i32
    %1 = tpu.assume_multiple %0, 16 : i32
    %2 = arith.index_cast %1 : i32 to index
    %c0 = arith.constant 0 : index
    %3 = vector.load %arg1[%2, %c0] : memref<16x128xf32, #tpu.memory_space<vmem>>, vector<16x128xf32>
    %c0_0 = arith.constant 0 : index
    %c0_1 = arith.constant 0 : index
    %4 = vector.load %arg1[%c0_0, %c0_1] : memref<16x128xf32, #tpu.memory_space<vmem>>, vector<16x128xf32>
    %cst = arith.constant dense<0.000000e+00> : vector<16x16xf32>
    %5 = tpu.matmul %3, %4, %cst {dimension_numbers = #tpu.dot_dimension_numbers<[1], [1], [0], [0], [0, 0, 1, 0], [], []>} : vector<16x128xf32>, vector<16x128xf32>, vector<16x16xf32> -> vector<16x16xf32>
    %6 = tpu.iota {dimensions = array<i32: 1>} : vector<16x16xi32>
    %7 = tpu.iota {dimensions = array<i32: 0>} : vector<16x1xi32>
    %8 = vector.broadcast %1 : i32 to vector<16x1xi32>
    %9 = arith.addi %7, %8 : vector<16x1xi32>
    %10 = vector.broadcast %9 : vector<16x1xi32> to vector<16x16xi32>
    %11 = arith.cmpi eq, %6, %10 : vector<16x16xi32>
    %cst_2 = arith.constant 14.2857141 : f32
    %12 = vector.broadcast %cst_2 : f32 to vector<16x16xf32>
    %13 = arith.subf %5, %12 : vector<16x16xf32>
    %14 = math.exp %13 : vector<16x16xf32>
    %cst_3 = arith.constant 0.000000e+00 : f32
    %15 = vector.broadcast %cst_3 : f32 to vector<16x16xf32>
    %16 = arith.select %11, %15, %14 : vector<16x16xi1>, vector<16x16xf32>
    %cst_4 = arith.constant dense<0.000000e+00> : vector<16xf32>
    %17 = vector.multi_reduction <add>, %16, %cst_4 [1] : vector<16x16xf32> to vector<16xf32>
    %18 = vector.shape_cast %17 : vector<16xf32> to vector<16x1xf32>
    %cst_5 = arith.constant 3.7492498E-6 : f32
    %19 = vector.broadcast %cst_5 : f32 to vector<16x1xf32>
    %20 = arith.subf %18, %19 : vector<16x1xf32>
    %cst_6 = arith.constant 9.99999996E-13 : f32
    %21 = vector.broadcast %cst_6 : f32 to vector<16x1xf32>
    %22 = arith.addf %20, %21 : vector<16x1xf32>
    %23 = math.log %22 : vector<16x1xf32>
    %c0_7 = arith.constant 0 : index
    %c0_8 = arith.constant 0 : index
    %24 = vector.load %arg2[%c0_7, %c0_8] : memref<16x1xi32, #tpu.memory_space<vmem>>, vector<16x1xi32>
    %c0_9 = arith.constant 0 : index
    %c0_10 = arith.constant 0 : index
    %25 = vector.load %arg3[%c0_9, %c0_10] : memref<1x16xi32, #tpu.memory_space<vmem>>, vector<1x16xi32>
    %26 = vector.broadcast %24 : vector<16x1xi32> to vector<16x16xi32>
    %27 = vector.broadcast %25 : vector<1x16xi32> to vector<16x16xi32>
    %28 = arith.cmpi eq, %26, %27 : vector<16x16xi32>
    %cst_11 = arith.constant 0.000000e+00 : f32
    %29 = vector.broadcast %cst_11 : f32 to vector<16x16xf32>
    %30 = arith.select %28, %5, %29 : vector<16x16xi1>, vector<16x16xf32>
    %cst_12 = arith.constant dense<0.000000e+00> : vector<16xf32>
    %31 = vector.multi_reduction <add>, %30, %cst_12 [1] : vector<16x16xf32> to vector<16xf32>
    %32 = vector.shape_cast %31 : vector<16xf32> to vector<16x1xf32>
    %cst_13 = arith.constant 1.000000e+00 : f32
    %cst_14 = arith.constant 0.000000e+00 : f32
    %33 = vector.broadcast %cst_13 : f32 to vector<16x16xf32>
    %34 = vector.broadcast %cst_14 : f32 to vector<16x16xf32>
    %35 = arith.select %28, %33, %34 : vector<16x16xi1>, vector<16x16xf32>
    %cst_15 = arith.constant dense<0.000000e+00> : vector<16xf32>
    %36 = vector.multi_reduction <add>, %35, %cst_15 [1] : vector<16x16xf32> to vector<16xf32>
    %37 = vector.shape_cast %36 : vector<16xf32> to vector<16x1xf32>
    %38 = arith.mulf %3, %3 : vector<16x128xf32>
    %cst_16 = arith.constant dense<0.000000e+00> : vector<16xf32>
    %39 = vector.multi_reduction <add>, %38, %cst_16 [1] : vector<16x128xf32> to vector<16xf32>
    %40 = vector.shape_cast %39 : vector<16xf32> to vector<16x1xf32>
    %41 = arith.subf %32, %40 : vector<16x1xf32>
    %cst_17 = arith.constant 1.000000e+00 : f32
    %42 = vector.broadcast %cst_17 : f32 to vector<16x1xf32>
    %43 = arith.subf %37, %42 : vector<16x1xf32>
    %cst_18 = arith.constant 9.99999996E-13 : f32
    %44 = vector.broadcast %cst_18 : f32 to vector<16x1xf32>
    %45 = arith.addf %43, %44 : vector<16x1xf32>
    %46 = arith.divf %41, %45 : vector<16x1xf32>
    %cst_19 = arith.constant 14.2857141 : f32
    %47 = vector.broadcast %cst_19 : f32 to vector<16x1xf32>
    %48 = arith.subf %46, %47 : vector<16x1xf32>
    %49 = arith.subf %48, %23 : vector<16x1xf32>
    %c10_i32 = arith.constant 10 : i32
    %50 = vector.broadcast %c10_i32 : i32 to vector<16x1xi32>
    %51 = arith.cmpi slt, %9, %50 : vector<16x1xi32>
    %cst_20 = arith.constant 5.000000e-01 : f32
    %52 = vector.broadcast %cst_20 : f32 to vector<16x1xf32>
    %53 = arith.cmpf ogt, %43, %52 : vector<16x1xf32>
    %54 = arith.andi %51, %53 : vector<16x1xi1>
    %cst_21 = arith.constant 0.000000e+00 : f32
    %55 = vector.broadcast %cst_21 : f32 to vector<16x1xf32>
    %56 = arith.subf %55, %49 : vector<16x1xf32>
    %cst_22 = arith.constant 0.000000e+00 : f32
    %57 = vector.broadcast %cst_22 : f32 to vector<16x1xf32>
    %58 = arith.select %54, %56, %57 : vector<16x1xi1>, vector<16x1xf32>
    %c0_23 = arith.constant 0 : index
    %c0_24 = arith.constant 0 : index
    %59 = vector.load %arg4[%c0_23, %c0_24] : memref<16x1xf32, #tpu.memory_space<vmem>>, vector<16x1xf32>
    tpu.vector_store %arg4[%c0_23, %c0_24], %58 {strides = array<i32>} : memref<16x1xf32, #tpu.memory_space<vmem>>, vector<16x1xf32>,
    return
  }
  func.func @transform_0(%arg0: i32) -> (i32, i32) {
    %c0_i32 = arith.constant 0 : i32
    %c0_i32_0 = arith.constant 0 : i32
    %c0_i32_1 = arith.constant 0 : i32
    return %c0_i32, %c0_i32_0 : i32, i32
  }
  func.func @transform_1(%arg0: i32) -> (i32, i32) {
    %c0_i32 = arith.constant 0 : i32
    %c0_i32_0 = arith.constant 0 : i32
    return %arg0, %c0_i32 : i32, i32
  }
  func.func @transform_2(%arg0: i32) -> (i32, i32) {
    %c0_i32 = arith.constant 0 : i32
    %c0_i32_0 = arith.constant 0 : i32
    %c0_i32_1 = arith.constant 0 : i32
    return %c0_i32, %c0_i32_0 : i32, i32
  }
  func.func @transform_3(%arg0: i32) -> (i32, i32) {
    %c0_i32 = arith.constant 0 : i32
    %c0_i32_0 = arith.constant 0 : i32
    return %arg0, %c0_i32 : i32, i32
  }
}

module attributes {stable_mosaic.version = 11 : i64} {
  func.func @_supcon_kernel(%arg0: i32, %arg1: memref<16x128xf32, #tpu.memory_space<vmem>>, %arg2: memref<16x1xi32, #tpu.memory_space<vmem>>, %arg3: memref<1x16xi32, #tpu.memory_space<vmem>>, %arg4: memref<16x1xf32, #tpu.memory_space<vmem>>) attributes {dimension_semantics = [#tpu.dimension_semantics<parallel>], iteration_bounds = array<i64: 1>, scalar_prefetch = 0 : i64, scratch_operands = 0 : i64, tpu.core_type = #tpu.core_type<tc>, window_params = [{pipeline_mode = #tpu.pipeline_mode<synchronous>, transform_indices = @transform_0, window_bounds = array<i64: 16, 128>}, {transform_indices = @transform_1, window_bounds = array<i64: 16, 1>}, {pipeline_mode = #tpu.pipeline_mode<synchronous>, transform_indices = @transform_2, window_bounds = array<i64: 1, 16>}, {transform_indices = @transform_3, window_bounds = array<i64: 16, 1>}]} {
    %c16_i32 = arith.constant 16 : i32
    %0 = arith.muli %arg0, %c16_i32 : i32
    %1 = tpu.assume_multiple %0, 16 : i32
    %2 = arith.index_cast %1 : i32 to index
    %c0 = arith.constant 0 : index
    %3 = vector.load %arg1[%2, %c0] : memref<16x128xf32, #tpu.memory_space<vmem>>, vector<16x128xf32>
    %c0_0 = arith.constant 0 : index
    %c0_1 = arith.constant 0 : index
    %4 = vector.load %arg1[%c0_0, %c0_1] : memref<16x128xf32, #tpu.memory_space<vmem>>, vector<16x128xf32>
    %cst = arith.constant dense<0.000000e+00> : vector<16x16xf32>
    %5 = tpu.matmul %3, %4, %cst {dimension_numbers = #tpu.dot_dimension_numbers<[1], [1], [0], [0], [0, 0, 1, 0], [], []>} : vector<16x128xf32>, vector<16x128xf32>, vector<16x16xf32> -> vector<16x16xf32>
    %6 = tpu.iota {dimensions = array<i32: 1>} : vector<16x16xi32>
    %7 = tpu.iota {dimensions = array<i32: 0>} : vector<16x1xi32>
    %8 = vector.broadcast %1 : i32 to vector<16x1xi32>
    %9 = arith.addi %7, %8 : vector<16x1xi32>
    %10 = vector.broadcast %9 : vector<16x1xi32> to vector<16x16xi32>
    %11 = arith.cmpi eq, %6, %10 : vector<16x16xi32>
    %cst_2 = arith.constant 14.2857141 : f32
    %12 = vector.broadcast %cst_2 : f32 to vector<16x16xf32>
    %13 = arith.subf %5, %12 : vector<16x16xf32>
    %14 = math.exp %13 : vector<16x16xf32>
    %cst_3 = arith.constant 0.000000e+00 : f32
    %15 = vector.broadcast %cst_3 : f32 to vector<16x16xf32>
    %16 = arith.select %11, %15, %14 : vector<16x16xi1>, vector<16x16xf32>
    %cst_4 = arith.constant dense<0.000000e+00> : vector<16xf32>
    %17 = vector.multi_reduction <add>, %16, %cst_4 [1] : vector<16x16xf32> to vector<16xf32>
    %18 = vector.shape_cast %17 : vector<16xf32> to vector<16x1xf32>
    %cst_5 = arith.constant 3.7492498E-6 : f32
    %19 = vector.broadcast %cst_5 : f32 to vector<16x1xf32>
    %20 = arith.subf %18, %19 : vector<16x1xf32>
    %cst_6 = arith.constant 9.99999996E-13 : f32
    %21 = vector.broadcast %cst_6 : f32 to vector<16x1xf32>
    %22 = arith.addf %20, %21 : vector<16x1xf32>
    %23 = math.log %22 : vector<16x1xf32>
    %c0_7 = arith.constant 0 : index
    %c0_8 = arith.constant 0 : index
    %24 = vector.load %arg2[%c0_7, %c0_8] : memref<16x1xi32, #tpu.memory_space<vmem>>, vector<16x1xi32>
    %c0_9 = arith.constant 0 : index
    %c0_10 = arith.constant 0 : index
    %25 = vector.load %arg3[%c0_9, %c0_10] : memref<1x16xi32, #tpu.memory_space<vmem>>, vector<1x16xi32>
    %26 = vector.broadcast %24 : vector<16x1xi32> to vector<16x16xi32>
    %27 = vector.broadcast %25 : vector<1x16xi32> to vector<16x16xi32>
    %28 = arith.cmpi eq, %26, %27 : vector<16x16xi32>
    %cst_11 = arith.constant 0.000000e+00 : f32
    %29 = vector.broadcast %cst_11 : f32 to vector<16x16xf32>
    %30 = arith.select %28, %5, %29 : vector<16x16xi1>, vector<16x16xf32>
    %cst_12 = arith.constant dense<0.000000e+00> : vector<16xf32>
    %31 = vector.multi_reduction <add>, %30, %cst_12 [1] : vector<16x16xf32> to vector<16xf32>
    %32 = vector.shape_cast %31 : vector<16xf32> to vector<16x1xf32>
    %cst_13 = arith.constant 1.000000e+00 : f32
    %cst_14 = arith.constant 0.000000e+00 : f32
    %33 = vector.broadcast %cst_13 : f32 to vector<16x16xf32>
    %34 = vector.broadcast %cst_14 : f32 to vector<16x16xf32>
    %35 = arith.select %28, %33, %34 : vector<16x16xi1>, vector<16x16xf32>
    %cst_15 = arith.constant dense<0.000000e+00> : vector<16xf32>
    %36 = vector.multi_reduction <add>, %35, %cst_15 [1] : vector<16x16xf32> to vector<16xf32>
    %37 = vector.shape_cast %36 : vector<16xf32> to vector<16x1xf32>
    %38 = arith.mulf %3, %3 : vector<16x128xf32>
    %cst_16 = arith.constant dense<0.000000e+00> : vector<16xf32>
    %39 = vector.multi_reduction <add>, %38, %cst_16 [1] : vector<16x128xf32> to vector<16xf32>
    %40 = vector.shape_cast %39 : vector<16xf32> to vector<16x1xf32>
    %41 = arith.subf %32, %40 : vector<16x1xf32>
    %cst_17 = arith.constant 1.000000e+00 : f32
    %42 = vector.broadcast %cst_17 : f32 to vector<16x1xf32>
    %43 = arith.subf %37, %42 : vector<16x1xf32>
    %cst_18 = arith.constant 9.99999996E-13 : f32
    %44 = vector.broadcast %cst_18 : f32 to vector<16x1xf32>
    %45 = arith.addf %43, %44 : vector<16x1xf32>
    %46 = arith.divf %41, %45 : vector<16x1xf32>
    %cst_19 = arith.constant 14.2857141 : f32
    %47 = vector.broadcast %cst_19 : f32 to vector<16x1xf32>
    %48 = arith.subf %46, %47 : vector<16x1xf32>
    %49 = arith.subf %48, %23 : vector<16x1xf32>
    %c10_i32 = arith.constant 10 : i32
    %50 = vector.broadcast %c10_i32 : i32 to vector<16x1xi32>
    %51 = arith.cmpi slt, %9, %50 : vector<16x1xi32>
    %cst_20 = arith.constant 5.000000e-01 : f32
    %52 = vector.broadcast %cst_20 : f32 to vector<16x1xf32>
    %53 = arith.cmpf ogt, %43, %52 : vector<16x1xf32>
    %54 = arith.andi %51, %53 : vector<16x1xi1>
    %cst_21 = arith.constant 0.000000e+00 : f32
    %55 = vector.broadcast %cst_21 : f32 to vector<16x1xf32>
    %56 = arith.subf %55, %49 : vector<16x1xf32>
    %cst_22 = arith.constant 0.000000e+00 : f32
    %57 = vector.broadcast %cst_22 : f32 to vector<16x1xf32>
    %58 = arith.select %54, %56, %57 : vector<16x1xi1>, vector<16x1xf32>
    %c0_23 = arith.constant 0 : index
    %c0_24 = arith.constant 0 : index
    %59 = vector.load %arg4[%c0_23, %c0_24] : memref<16x1xf32, #tpu.memory_space<vmem>>, vector<16x1xf32>
    tpu.vector_store %arg4[%c0_23, %c0_24], %58 {strides = array<i32>} : memref<16x1xf32, #tpu.memory_space<vmem>>, vector<16x1xf32>,
    return
  }
  func.func @transform_0(%arg0: i32) -> (i32, i32) {
    %c0_i32 = arith.constant 0 : i32
    %c0_i32_0 = arith.constant 0 : i32
    %c0_i32_1 = arith.constant 0 : i32
    return %c0_i32, %c0_i32_0 : i32, i32
  }
  func.func @transform_1(%arg0: i32) -> (i32, i32) {
    %c0_i32 = arith.constant 0 : i32
    %c0_i32_0 = arith.constant 0 : i32
    return %arg0, %c0_i32 : i32, i32
  }
  func.func @transform_2(%arg0: i32) -> (i32, i32) {
    %c0_i32 = arith.constant 0 : i32
    %c0_i32_0 = arith.constant 0 : i32
    %c0_i32_1 = arith.constant 0 : i32
    return %c0_i32, %c0_i32_0 : i32, i32
  }
  func.func @transform_3(%arg0: i32) -> (i32, i32) {
    %c0_i32 = arith.constant 0 : i32
    %c0_i32_0 = arith.constant 0 : i32
    return %arg0, %c0_i32 : i32, i32
  }
}

</mosaic_0001>

<llo_original>
// kernel: tpu_custom_call.1
$region0: #{tpu_custom_call.1}
  #allocation0 [shape = 'u32[]', space=smem, size = 0x4, offset = 0x4, fixed_abs, tag = 'smem constant byte address 0x4 - core index']
  #allocation1 [shape = 'u32[144,128]{1,0:T(1,128)}', space=vmem, size = 0x12000, scoped, tag = 'internal scratch']
  %s0 = inlined_call_operand.vmem [shape: f32[16,128], index: 0, kind: input, shape index: {}]
  %s1 = inlined_call_operand.vmem [shape: s32[16,1], index: 1, kind: input, shape index: {}]
  %s2 = inlined_call_operand.vmem [shape: s32[1,16], index: 2, kind: input, shape index: {}]
  %s3 = inlined_call_operand.vmem [shape: f32[16,1], index: 3, kind: output, shape index: {}]
  %s4 = sld [smem:[#allocation0]]
  $region22: #{tpu_custom_call.1} parent=0
    _
  %s6 = ssub.s32 1, %s4
  %s7 = scalar_select 0, %s6, %s4
  // Predicated region
  $region2: #{tpu_custom_call.1} parent=0 // pred_check
    _
  $region3: #{tpu_custom_call.1} parent=0 // pred_check_branch
    %9 = sbr.rel (0) target = $region5
  $region4: #{tpu_custom_call.1} parent=0 // pred_region
    _
  $region5: #{tpu_custom_call.1} parent=0 // pred_fallthru
    _
  // Predicated region
  $region6: #{tpu_custom_call.1} parent=0 // pred_check
    _
  $region7: #{tpu_custom_call.1} parent=0 // pred_check_branch
    %11 = sbr.rel (0) target = $region9
  $region8: #{tpu_custom_call.1} parent=0 // pred_region
    _
  $region9: #{tpu_custom_call.1} parent=0 // pred_fallthru
    _
  // Predicated region
  $region10: #{tpu_custom_call.1} parent=0 // pred_check
    _
  $region11: #{tpu_custom_call.1} parent=0 // pred_check_branch
    %13 = sbr.rel (0) target = $region13
  $region12: #{tpu_custom_call.1} parent=0 // pred_region
    _
  $region13: #{tpu_custom_call.1} parent=0 // pred_fallthru
    _
  %s14 = smul.u32 0, 16
  %s15 = scalar_lea.vmem %s0, %s14
  %v16 = vld [vmem:[%s15] sm:$0xff]
  %v17 = vld [vmem:[%s15 + $0x8] sm:$0xff]
  %v18 = vld [vmem:[%s0] sm:$0xff]
  %v19 = vld [vmem:[%s0 + $0x8] sm:$0xff]
  %20 = vmatprep.subr.mxu0 0.0
  %21 = vmatpush1.xpose.msra.mxu0 %v18
  %22 = vmatprep.subr.mxu0 0.0
  %23 = vmatpush1.xpose.msra.mxu0 %v19
  %24 = vmatprep.subr.mxu0 0.0
  %25 = vmatpush1.xpose.msra.mxu0 0.0
  %26 = vmatprep.subr.mxu0 0.0
  %27 = vmatpush1.xpose.msra.mxu0 0.0
  %28 = vmatprep.subr.mxu0 0.0
  %29 = vmatpush1.xpose.msra.mxu0 0.0
  %30 = vmatprep.subr.mxu0 0.0
  %31 = vmatpush1.xpose.msra.mxu0 0.0
  %32 = vmatprep.subr.mxu0 0.0
  %33 = vmatpush1.xpose.msra.mxu0 0.0
  %34 = vmatprep.subr.mxu0 0.0
  %35 = vmatpush1.xpose.msra.mxu0 0.0
  %36 = vmatprep.subr.mxu0 0.0
  %37 = vmatpush1.xpose.msra.mxu0 0.0
  %38 = vmatprep.subr.mxu0 0.0
  %39 = vmatpush1.xpose.msra.mxu0 0.0
  %40 = vmatprep.subr.mxu0 0.0
  %41 = vmatpush1.xpose.msra.mxu0 0.0
  %42 = vmatprep.subr.mxu0 0.0
  %43 = vmatpush1.xpose.msra.mxu0 0.0
  %44 = vmatprep.subr.mxu0 0.0
  %45 = vmatpush1.xpose.msra.mxu0 0.0
  %46 = vmatprep.subr.mxu0 0.0
  %47 = vmatpush1.xpose.msra.mxu0 0.0
  %48 = vmatprep.subr.mxu0 0.0
  %49 = vmatpush1.xpose.msra.mxu0 0.0
  %50 = vmatprep.subr.mxu0 0.0
  %51 = vmatpush1.xpose.msra.mxu0 0.0
  %52 = vmatprep.subr.mxu0 0.0
  %53 = vmatpush1.xpose.msra.mxu0 0.0
  %54 = vmatprep.subr.mxu0 0.0
  %55 = vmatpush1.xpose.msra.mxu0 0.0
  %56 = vmatprep.subr.mxu0 0.0
  %57 = vmatpush1.xpose.msra.mxu0 0.0
  %58 = vmatprep.subr.mxu0 0.0
  %59 = vmatpush1.xpose.msra.mxu0 0.0
  %60 = vmatprep.subr.mxu0 0.0
  %61 = vmatpush1.xpose.msra.mxu0 0.0
  %62 = vmatprep.subr.mxu0 0.0
  %63 = vmatpush1.xpose.msra.mxu0 0.0
  %64 = vmatprep.subr.mxu0 0.0
  %65 = vmatpush1.xpose.msra.mxu0 0.0
  %66 = vmatprep.subr.mxu0 0.0
  %67 = vmatpush1.xpose.msra.mxu0 0.0
  %68 = vmatprep.subr.mxu0 0.0
  %69 = vmatpush1.xpose.msra.mxu0 0.0
  %70 = vmatprep.subr.mxu0 0.0
  %71 = vmatpush1.xpose.msra.mxu0 0.0
  %72 = vmatprep.subr.mxu0 0.0
  %73 = vmatpush1.xpose.msra.mxu0 0.0
  %74 = vmatprep.subr.mxu0 0.0
  %75 = vmatpush1.xpose.msra.mxu0 0.0
  %76 = vmatprep.subr.mxu0 0.0
  %77 = vmatpush1.xpose.msra.mxu0 0.0
  %78 = vmatprep.subr.mxu0 0.0
  %79 = vmatpush1.xpose.msra.mxu0 0.0
  %80 = vmatprep.subr.mxu0 0.0
  %81 = vmatpush1.xpose.msra.mxu0 0.0
  %82 = vmatprep.subr.mxu0 0.0
  %83 = vmatpush1.xpose.msra.mxu0 0.0
  %84 = vmatprep.mubr.f32.mxu0 0.0
  %85 = vmatmul.mubr.f32.gmra.mrb[0].mxu0 %v16
  %v86 = vpop.f32.mrb[0].mxu0
  %v87 = vadd.f32 0.0, %v86
  %v88 = vpop.f32.mrb[0].mxu0
  %89 = vmatprep.mubr.f32.mxu0 0.0
  %90 = vmatmul.mubr.f32.gmra.mrb[0].mxu0 %v17
  %v91 = vpop.f32.mrb[0].mxu0
  %v92 = vadd.f32 0.0, %v91
  %v93 = vpop.f32.mrb[0].mxu0
  %94 = vdwg.mxu0
  %v95 = vlaneseq
  %v96 = vand.u32 %v95, 127
  %v97 = vlaneseq
  %v98 = vshrl.u32 %v97, 7
  %v99 = vadd.s32 %v98, 8
  %v100 = vstv %s14
  %v101 = vadd.s32 %v98, %v100
  %v102 = vadd.s32 %v99, %v100
  %vm103 = vcmp.eq.s32.totalorder %v96, %v101
  %vm104 = vcmp.eq.s32.totalorder %v96, %v102
  %v105 = vsub.f32 %v87, 14.285714
  %v106 = vsub.f32 %v92, 14.285714
  %v107 = vmul.f32 %v105, 1.442695
  %v108 = vpow.pop %v107
  %v109 = vmul.f32 %v106, 1.442695
  %v110 = vpow.pop %v109
  %v111 = vsel %vm103, 0.0, %v108
  %v112 = vsel %vm104, 0.0, %v110
  %vm113 = vcmask 130048
  %v114 = vsel %vm113, %v111, 0.0
  %115 = vadd.xlane.f32.xlu0 %v114
  %v116 = vpop.xlane.xlu0 %115
  %v117 = vsel %vm113, %v112, 0.0
  %118 = vadd.xlane.f32.xlu0 %v117
  %v119 = vpop.xlane.xlu0 %118
  %v120 = vsub.f32 %v116, 3.7492498e-06
  %v121 = vsub.f32 %v119, 3.7492498e-06
  %v122 = vadd.f32 %v120, 1e-12
  %v123 = vadd.f32 %v121, 1e-12
  %v124 = vlog2.pop %v122
  %v125 = vmul.f32 %v124, 0.6931472
  %v126 = vlog2.pop %v123
  %v127 = vmul.f32 %v126, 0.6931472
  %v128 = vld [vmem:[%s1] sm:$0xff]
  %v129 = vld [vmem:[%s1 + $0x8] sm:$0xff]
  %v130 = vld [vmem:[%s2] sm:$0x1]
  %131 = vset.pattern.permute.xlu0 0
  %132 = vperm.xlu0 %131, %v128
  %v133 = vpop.permute.xlu0 %132
  %134 = vset.pattern.permute.xlu0 0
  %135 = vperm.xlu0 %134, %v129
  %v136 = vpop.permute.xlu0 %135
  %v137 = vlaneseq
  %v138 = vshrl.u32 %v137, 7
  %v139 = vsub.s32 0, %v138
  %v140 = vrot.slane %v130, %v139
  %vm141 = vcmp.eq.s32.totalorder %v133, %v140
  %vm142 = vcmp.eq.s32.totalorder %v136, %v140
  %v143 = vsel %vm141, %v87, 0.0
  %v144 = vsel %vm142, %v92, 0.0
  %v145 = vsel %vm113, %v143, 0.0
  %146 = vadd.xlane.f32.xlu0 %v145
  %v147 = vpop.xlane.xlu0 %146
  %v148 = vsel %vm113, %v144, 0.0
  %149 = vadd.xlane.f32.xlu0 %v148
  %v150 = vpop.xlane.xlu0 %149
  %v151 = vsel %vm141, 1.0, 0.0
  %v152 = vsel %vm142, 1.0, 0.0
  %v153 = vsel %vm113, %v151, 0.0
  %154 = vadd.xlane.f32.xlu0 %v153
  %v155 = vpop.xlane.xlu0 %154
  %v156 = vsel %vm113, %v152, 0.0
  %157 = vadd.xlane.f32.xlu0 %v156
  %v158 = vpop.xlane.xlu0 %157
  %v159 = vmul.f32 %v16, %v16
  %v160 = vmul.f32 %v17, %v17
  %161 = vadd.xlane.f32.xlu0 %v159
  %v162 = vpop.xlane.xlu0 %161
  %163 = vadd.xlane.f32.xlu0 %v160
  %v164 = vpop.xlane.xlu0 %163
  %v165 = vsub.f32 %v147, %v162
  %v166 = vsub.f32 %v150, %v164
  %v167 = vsub.f32 %v155, 1.0
  %v168 = vsub.f32 %v158, 1.0
  %v169 = vadd.f32 %v167, 1e-12
  %v170 = vadd.f32 %v168, 1e-12
  %v171 = vrcp.pop %v169
  %v172 = vmul.f32 %v165, %v171
  %v173 = vrcp.pop %v170
  %v174 = vmul.f32 %v166, %v173
  %v175 = vsub.f32 %v172, 14.285714
  %v176 = vsub.f32 %v174, 14.285714
  %v177 = vsub.f32 %v175, %v125
  %v178 = vsub.f32 %v176, %v127
  %vm179 = vcmp.lt.s32.totalorder %v101, 10
  %vm180 = vcmp.lt.s32.totalorder %v102, 10
  %vm181 = vcmp.gt.f32.partialorder %v167, 0.5
  %vm182 = vcmp.gt.f32.partialorder %v168, 0.5
  %vm183 = vmand %vm179, %vm181
  %vm184 = vmand %vm180, %vm182
  %v185 = vsub.f32 0.0, %v177
  %v186 = vsub.f32 0.0, %v178
  %v187 = vsel %vm183, %v185, 0.0
  %v188 = vsel %vm184, %v186, 0.0
  %vm189 = vcmask 7168
  %190 = vst.msk [vmem:[%s3] sm:$0xff] %vm189, %v187
  %191 = vst.msk [vmem:[%s3 + $0x8] sm:$0xff] %vm189, %v188
  // Predicated region
  $region14: #{tpu_custom_call.1} parent=0 // pred_check
    _
  $region15: #{tpu_custom_call.1} parent=0 // pred_check_branch
    %193 = sbr.rel (0) target = $region17
  $region16: #{tpu_custom_call.1} parent=0 // pred_region
    _
  $region17: #{tpu_custom_call.1} parent=0 // pred_fallthru
    _
  // Predicated region
  $region18: #{tpu_custom_call.1} parent=0 // pred_check
    _
  $region19: #{tpu_custom_call.1} parent=0 // pred_check_branch
    %195 = sbr.rel (0) target = $region21
  $region20: #{tpu_custom_call.1} parent=0 // pred_region
    _
  $region21: #{tpu_custom_call.1} parent=0 // pred_fallthru
    _

// kernel: tpu_custom_call.1
$region0: #{tpu_custom_call.1}
  #allocation0 [shape = 'u32[]', space=smem, size = 0x4, offset = 0x4, fixed_abs, tag = 'smem constant byte address 0x4 - core index']
  #allocation1 [shape = 'u32[144,128]{1,0:T(1,128)}', space=vmem, size = 0x12000, scoped, tag = 'internal scratch']
  %s0 = inlined_call_operand.vmem [shape: f32[16,128], index: 0, kind: input, shape index: {}]
  %s1 = inlined_call_operand.vmem [shape: s32[16,1], index: 1, kind: input, shape index: {}]
  %s2 = inlined_call_operand.vmem [shape: s32[1,16], index: 2, kind: input, shape index: {}]
  %s3 = inlined_call_operand.vmem [shape: f32[16,1], index: 3, kind: output, shape index: {}]
  %s4 = sld [smem:[#allocation0]]
  $region22: #{tpu_custom_call.1} parent=0
    _
  %s6 = ssub.s32 1, %s4
  %s7 = scalar_select 0, %s6, %s4
  // Predicated region
  $region2: #{tpu_custom_call.1} parent=0 // pred_check
    _
  $region3: #{tpu_custom_call.1} parent=0 // pred_check_branch
    %9 = sbr.rel (0) target = $region5
  $region4: #{tpu_custom_call.1} parent=0 // pred_region
    _
  $region5: #{tpu_custom_call.1} parent=0 // pred_fallthru
    _
  // Predicated region
  $region6: #{tpu_custom_call.1} parent=0 // pred_check
    _
  $region7: #{tpu_custom_call.1} parent=0 // pred_check_branch
    %11 = sbr.rel (0) target = $region9
  $region8: #{tpu_custom_call.1} parent=0 // pred_region
    _
  $region9: #{tpu_custom_call.1} parent=0 // pred_fallthru
    _
  // Predicated region
  $region10: #{tpu_custom_call.1} parent=0 // pred_check
    _
  $region11: #{tpu_custom_call.1} parent=0 // pred_check_branch
    %13 = sbr.rel (0) target = $region13
  $region12: #{tpu_custom_call.1} parent=0 // pred_region
    _
  $region13: #{tpu_custom_call.1} parent=0 // pred_fallthru
    _
  %s14 = smul.u32 0, 16
  %s15 = scalar_lea.vmem %s0, %s14
  %v16 = vld [vmem:[%s15] sm:$0xff]
  %v17 = vld [vmem:[%s15 + $0x8] sm:$0xff]
  %v18 = vld [vmem:[%s0] sm:$0xff]
  %v19 = vld [vmem:[%s0 + $0x8] sm:$0xff]
  %20 = vmatprep.subr.mxu0 0.0
  %21 = vmatpush1.xpose.msra.mxu0 %v18
  %22 = vmatprep.subr.mxu0 0.0
  %23 = vmatpush1.xpose.msra.mxu0 %v19
  %24 = vmatprep.subr.mxu0 0.0
  %25 = vmatpush1.xpose.msra.mxu0 0.0
  %26 = vmatprep.subr.mxu0 0.0
  %27 = vmatpush1.xpose.msra.mxu0 0.0
  %28 = vmatprep.subr.mxu0 0.0
  %29 = vmatpush1.xpose.msra.mxu0 0.0
  %30 = vmatprep.subr.mxu0 0.0
  %31 = vmatpush1.xpose.msra.mxu0 0.0
  %32 = vmatprep.subr.mxu0 0.0
  %33 = vmatpush1.xpose.msra.mxu0 0.0
  %34 = vmatprep.subr.mxu0 0.0
  %35 = vmatpush1.xpose.msra.mxu0 0.0
  %36 = vmatprep.subr.mxu0 0.0
  %37 = vmatpush1.xpose.msra.mxu0 0.0
  %38 = vmatprep.subr.mxu0 0.0
  %39 = vmatpush1.xpose.msra.mxu0 0.0
  %40 = vmatprep.subr.mxu0 0.0
  %41 = vmatpush1.xpose.msra.mxu0 0.0
  %42 = vmatprep.subr.mxu0 0.0
  %43 = vmatpush1.xpose.msra.mxu0 0.0
  %44 = vmatprep.subr.mxu0 0.0
  %45 = vmatpush1.xpose.msra.mxu0 0.0
  %46 = vmatprep.subr.mxu0 0.0
  %47 = vmatpush1.xpose.msra.mxu0 0.0
  %48 = vmatprep.subr.mxu0 0.0
  %49 = vmatpush1.xpose.msra.mxu0 0.0
  %50 = vmatprep.subr.mxu0 0.0
  %51 = vmatpush1.xpose.msra.mxu0 0.0
  %52 = vmatprep.subr.mxu0 0.0
  %53 = vmatpush1.xpose.msra.mxu0 0.0
  %54 = vmatprep.subr.mxu0 0.0
  %55 = vmatpush1.xpose.msra.mxu0 0.0
  %56 = vmatprep.subr.mxu0 0.0
  %57 = vmatpush1.xpose.msra.mxu0 0.0
  %58 = vmatprep.subr.mxu0 0.0
  %59 = vmatpush1.xpose.msra.mxu0 0.0
  %60 = vmatprep.subr.mxu0 0.0
  %61 = vmatpush1.xpose.msra.mxu0 0.0
  %62 = vmatprep.subr.mxu0 0.0
  %63 = vmatpush1.xpose.msra.mxu0 0.0
  %64 = vmatprep.subr.mxu0 0.0
  %65 = vmatpush1.xpose.msra.mxu0 0.0
  %66 = vmatprep.subr.mxu0 0.0
  %67 = vmatpush1.xpose.msra.mxu0 0.0
  %68 = vmatprep.subr.mxu0 0.0
  %69 = vmatpush1.xpose.msra.mxu0 0.0
  %70 = vmatprep.subr.mxu0 0.0
  %71 = vmatpush1.xpose.msra.mxu0 0.0
  %72 = vmatprep.subr.mxu0 0.0
  %73 = vmatpush1.xpose.msra.mxu0 0.0
  %74 = vmatprep.subr.mxu0 0.0
  %75 = vmatpush1.xpose.msra.mxu0 0.0
  %76 = vmatprep.subr.mxu0 0.0
  %77 = vmatpush1.xpose.msra.mxu0 0.0
  %78 = vmatprep.subr.mxu0 0.0
  %79 = vmatpush1.xpose.msra.mxu0 0.0
  %80 = vmatprep.subr.mxu0 0.0
  %81 = vmatpush1.xpose.msra.mxu0 0.0
  %82 = vmatprep.subr.mxu0 0.0
  %83 = vmatpush1.xpose.msra.mxu0 0.0
  %84 = vmatprep.mubr.f32.mxu0 0.0
  %85 = vmatmul.mubr.f32.gmra.mrb[0].mxu0 %v16
  %v86 = vpop.f32.mrb[0].mxu0
  %v87 = vadd.f32 0.0, %v86
  %v88 = vpop.f32.mrb[0].mxu0
  %89 = vmatprep.mubr.f32.mxu0 0.0
  %90 = vmatmul.mubr.f32.gmra.mrb[0].mxu0 %v17
  %v91 = vpop.f32.mrb[0].mxu0
  %v92 = vadd.f32 0.0, %v91
  %v93 = vpop.f32.mrb[0].mxu0
  %94 = vdwg.mxu0
  %v95 = vlaneseq
  %v96 = vand.u32 %v95, 127
  %v97 = vlaneseq
  %v98 = vshrl.u32 %v97, 7
  %v99 = vadd.s32 %v98, 8
  %v100 = vstv %s14
  %v101 = vadd.s32 %v98, %v100
  %v102 = vadd.s32 %v99, %v100
  %vm103 = vcmp.eq.s32.totalorder %v96, %v101
  %vm104 = vcmp.eq.s32.totalorder %v96, %v102
  %v105 = vsub.f32 %v87, 14.285714
  %v106 = vsub.f32 %v92, 14.285714
  %v107 = vmul.f32 %v105, 1.442695
  %v108 = vpow.pop %v107
  %v109 = vmul.f32 %v106, 1.442695
  %v110 = vpow.pop %v109
  %v111 = vsel %vm103, 0.0, %v108
  %v112 = vsel %vm104, 0.0, %v110
  %vm113 = vcmask 130048
  %v114 = vsel %vm113, %v111, 0.0
  %115 = vadd.xlane.f32.xlu0 %v114
  %v116 = vpop.xlane.xlu0 %115
  %v117 = vsel %vm113, %v112, 0.0
  %118 = vadd.xlane.f32.xlu0 %v117
  %v119 = vpop.xlane.xlu0 %118
  %v120 = vsub.f32 %v116, 3.7492498e-06
  %v121 = vsub.f32 %v119, 3.7492498e-06
  %v122 = vadd.f32 %v120, 1e-12
  %v123 = vadd.f32 %v121, 1e-12
  %v124 = vlog2.pop %v122
  %v125 = vmul.f32 %v124, 0.6931472
  %v126 = vlog2.pop %v123
  %v127 = vmul.f32 %v126, 0.6931472
  %v128 = vld [vmem:[%s1] sm:$0xff]
  %v129 = vld [vmem:[%s1 + $0x8] sm:$0xff]
  %v130 = vld [vmem:[%s2] sm:$0x1]
  %131 = vset.pattern.permute.xlu0 0
  %132 = vperm.xlu0 %131, %v128
  %v133 = vpop.permute.xlu0 %132
  %134 = vset.pattern.permute.xlu0 0
  %135 = vperm.xlu0 %134, %v129
  %v136 = vpop.permute.xlu0 %135
  %v137 = vlaneseq
  %v138 = vshrl.u32 %v137, 7
  %v139 = vsub.s32 0, %v138
  %v140 = vrot.slane %v130, %v139
  %vm141 = vcmp.eq.s32.totalorder %v133, %v140
  %vm142 = vcmp.eq.s32.totalorder %v136, %v140
  %v143 = vsel %vm141, %v87, 0.0
  %v144 = vsel %vm142, %v92, 0.0
  %v145 = vsel %vm113, %v143, 0.0
  %146 = vadd.xlane.f32.xlu0 %v145
  %v147 = vpop.xlane.xlu0 %146
  %v148 = vsel %vm113, %v144, 0.0
  %149 = vadd.xlane.f32.xlu0 %v148
  %v150 = vpop.xlane.xlu0 %149
  %v151 = vsel %vm141, 1.0, 0.0
  %v152 = vsel %vm142, 1.0, 0.0
  %v153 = vsel %vm113, %v151, 0.0
  %154 = vadd.xlane.f32.xlu0 %v153
  %v155 = vpop.xlane.xlu0 %154
  %v156 = vsel %vm113, %v152, 0.0
  %157 = vadd.xlane.f32.xlu0 %v156
  %v158 = vpop.xlane.xlu0 %157
  %v159 = vmul.f32 %v16, %v16
  %v160 = vmul.f32 %v17, %v17
  %161 = vadd.xlane.f32.xlu0 %v159
  %v162 = vpop.xlane.xlu0 %161
  %163 = vadd.xlane.f32.xlu0 %v160
  %v164 = vpop.xlane.xlu0 %163
  %v165 = vsub.f32 %v147, %v162
  %v166 = vsub.f32 %v150, %v164
  %v167 = vsub.f32 %v155, 1.0
  %v168 = vsub.f32 %v158, 1.0
  %v169 = vadd.f32 %v167, 1e-12
  %v170 = vadd.f32 %v168, 1e-12
  %v171 = vrcp.pop %v169
  %v172 = vmul.f32 %v165, %v171
  %v173 = vrcp.pop %v170
  %v174 = vmul.f32 %v166, %v173
  %v175 = vsub.f32 %v172, 14.285714
  %v176 = vsub.f32 %v174, 14.285714
  %v177 = vsub.f32 %v175, %v125
  %v178 = vsub.f32 %v176, %v127
  %vm179 = vcmp.lt.s32.totalorder %v101, 10
  %vm180 = vcmp.lt.s32.totalorder %v102, 10
  %vm181 = vcmp.gt.f32.partialorder %v167, 0.5
  %vm182 = vcmp.gt.f32.partialorder %v168, 0.5
  %vm183 = vmand %vm179, %vm181
  %vm184 = vmand %vm180, %vm182
  %v185 = vsub.f32 0.0, %v177
  %v186 = vsub.f32 0.0, %v178
  %v187 = vsel %vm183, %v185, 0.0
  %v188 = vsel %vm184, %v186, 0.0
  %vm189 = vcmask 7168
  %190 = vst.msk [vmem:[%s3] sm:$0xff] %vm189, %v187
  %191 = vst.msk [vmem:[%s3 + $0x8] sm:$0xff] %vm189, %v188
  // Predicated region
  $region14: #{tpu_custom_call.1} parent=0 // pred_check
    _
  $region15: #{tpu_custom_call.1} parent=0 // pred_check_branch
    %193 = sbr.rel (0) target = $region17
  $region16: #{tpu_custom_call.1} parent=0 // pred_region
    _
  $region17: #{tpu_custom_call.1} parent=0 // pred_fallthru
    _
  // Predicated region
  $region18: #{tpu_custom_call.1} parent=0 // pred_check
    _
  $region19: #{tpu_custom_call.1} parent=0 // pred_check_branch
    %195 = sbr.rel (0) target = $region21
  $region20: #{tpu_custom_call.1} parent=0 // pred_region
    _
  $region21: #{tpu_custom_call.1} parent=0 // pred_fallthru
    _

</llo_original>
